<compile_context>
chip_gen: v5e
topology: v5e:2x2
jax: 0.10.0
libtpu: 0.0.40
codegen_flags: <defaults>
</compile_context>

<pallas_src>
import jax
import jax.numpy as jnp
from jax.experimental import pallas as pl
from jax.experimental.pallas import tpu as pltpu

# ----------------------------- model hyper-params -----------------------------
NUM_CATEGORIES = 20
EMBED_DIM      = 8          # E
CONV_OUT       = 16         # C
KERNEL_SIZES   = (3, 4)     # one odd, one even (even k exercises the MaxPool length drop)
NUM_CLASSES    = 5
BATCH          = 2          # B
SEQ_LEN        = 16         # L
OUT_LANES      = 128        # lane-dense padded output width

T_CONV = sum(KERNEL_SIZES)  # 7 real conv taps
T_TOT  = T_CONV + 1         # +1 constant pseudo-tap carrying the conv bias


def _conv_out_len(L, k):
    # Conv1d with padding = k // 2, stride 1, dilation 1
    return L + 2 * (k // 2) - k + 1


def _eff_len(L, k):
    # MaxPool1d(2,2, floor) + AdaptiveMaxPool1d(1)  ==  max over first 2*floor(L_out/2) rows
    return 2 * (_conv_out_len(L, k) // 2)


# ------------------------------- Pallas kernel --------------------------------
def make_kernel(B, Leff, t_tot, ncat, twoC):
    R = B * Leff  # rows of the conv-stage matmuls (32 here; multiple of 8)

    def kernel(codes_ref, wcomb_ref, fc_ref, out_ref):
        # codes_ref : (t_tot, R, 1) int32  — token id per (tap, position); -1 == padding
        # wcomb_ref : (t_tot, ncat, twoC)  — per-tap (emb_table @ conv_w_tap), bias in last tap
        # fc_ref    : (twoC + 1, 128)      — FC weight + bias row, lane-padded
        # out_ref   : (B, 128)             — lane-dense logits slab
        gidx = jax.lax.broadcasted_iota(jnp.int32, (R, ncat), 1)   # hoisted category iota

        # Embedding lookup + both conv paths, fused: per tap, a one-hot (R, ncat) built on
        # the VPU selects rows of the pre-combined weight on the MXU.  Padding codes (-1)
        # give an all-zero one-hot row == zero-padded convolution input.
        h = jnp.zeros((R, twoC), jnp.float32)
        for t in range(t_tot):                                     # static unroll, 8 tiny MXU passes
            oh = (codes_ref[t] == gidx).astype(jnp.float32)        # (R, ncat)
            h = h + jnp.dot(oh, wcomb_ref[t], preferred_element_type=jnp.float32)
        h = jnp.maximum(h, 0.0)                                    # conv bias (pseudo-tap) + ReLU

        # MaxPool1d(2,2,floor) + AdaptiveMaxPool1d(1) == max over the first Leff rows.
        # Leff is a multiple of 8, so splitting (B*Leff, 2C) -> (B, Leff, 2C) is
        # sublane-tile aligned and does not materialize a VMEM copy.
        feats = jnp.max(h.reshape(B, Leff, twoC), axis=1)          # (B, 2C)

        # TODO(synk): Dropout(p=0.3) is identity in eval mode; no RNG mask applied here.
        fc = fc_ref[...]
        logits = jnp.dot(feats, fc[:twoC, :],
                         preferred_element_type=jnp.float32) + fc[twoC:twoC + 1, :]
        out_ref[...] = logits.astype(out_ref.dtype)                # lane-dense (B, 128) store

    return kernel


# --------------------------- one-time parameter prep ---------------------------
def pack_params(params):
    """Hoisted out of the per-call hot path: build the packed kernel operands once."""
    emb_table, (w3, b3), (w4, b4), fcw, fcb = params
    C, twoC = CONV_OUT, 2 * CONV_OUT

    # Per-tap combined weight: wcomb[t] = emb_table @ w_tap  (embedding folded into the conv).
    # Taps 0..k3-1 feed channels [0, C); taps k3..k3+k4-1 feed channels [C, 2C).
    wcomb = jnp.zeros((T_TOT, NUM_CATEGORIES, twoC), jnp.float32)
    i = 0
    for (w, _b), col0 in (((w3, b3), 0), ((w4, b4), C)):
        for t in range(w.shape[0]):
            wt = jnp.einsum('ge,ec->gc', emb_table, w[t],
                            precision=jax.lax.Precision.HIGHEST)   # (NCAT, C), exact f32
            wcomb = wcomb.at[i, :, col0:col0 + C].set(wt)
            i += 1
    # Conv bias rides a constant pseudo-tap whose code is always category 0.
    wcomb = wcomb.at[T_CONV, 0, :C].set(b3[0])
    wcomb = wcomb.at[T_CONV, 0, C:].set(b4[0])
    # NOTE: at scaled sizes wcomb (and the in-kernel one-hot, which is exact in bf16) could
    # be cast to bf16 for MXU peak / half the DMA bytes; kept f32 here to preserve the
    # 1e-4 match against the f32 reference.

    # Packed FC params, padded to a lane-dense 128-wide output.
    fc_pack = jnp.zeros((twoC + 1, OUT_LANES), jnp.float32)
    fc_pack = fc_pack.at[:twoC, :NUM_CLASSES].set(fcw)
    fc_pack = fc_pack.at[twoC, :NUM_CLASSES].set(fcb[0])
    return wcomb, fc_pack


# --------------------------------- forward ------------------------------------
@jax.jit
def cnn2l_forward(X, wcomb, fc_pack):
    """X: (B, L) int32 token ids.  Returns (B, NUM_CLASSES) float32 logits."""
    B, L = X.shape
    twoC = 2 * CONV_OUT
    effs = [_eff_len(L, k) for k in KERNEL_SIZES]
    # TODO(synk): unequal pooled prefix lengths would need a per-row mask before the max;
    # not needed for kernel_sizes=(3, 4) at this L (both effective lengths are 16).
    assert all(e == effs[0] for e in effs), effs
    Leff = effs[0]
    pmax = max(k // 2 for k in KERNEL_SIZES)

    # ---- tiny integer-only prologue: pad ids + shifted tap windows (no gather,
    # ---- no f32 im2col, no unaligned lane concat) ----
    ids_pad = jnp.pad(X, ((0, 0), (pmax, pmax)), constant_values=-1)   # -1 == padding token
    slabs = []
    for k in KERNEL_SIZES:
        off = pmax - k // 2                                            # shift into the shared pad
        for t in range(k):
            slabs.append(ids_pad[:, off + t: off + t + Leff])          # (B, Leff) int32
    slabs.append(jnp.zeros((B, Leff), X.dtype))                        # bias pseudo-tap (cat 0)
    codes = jnp.stack(slabs, axis=0).reshape(T_TOT, B * Leff, 1)       # major-axis stack: aligned

    vmem = pl.BlockSpec(memory_space=pltpu.MemorySpace.VMEM)
    # NOTE: at this toy size a grid is pure overhead; if B scales, add grid=(pl.cdiv(B, TB),)
    # with codes spec ((T_TOT, TB*Leff, 1), lambda i: (0, i, 0)), weight specs pinned at the
    # origin, out spec ((TB, 128), lambda i: (i, 0)), and
    # compiler_params=pltpu.CompilerParams(dimension_semantics=("parallel",),
    #                                      vmem_limit_bytes=...)
    # so v7x's two TensorCores split the batch.  Size TB per generation: v7x has 64 MiB VMEM
    # (≈ half the v6e tile), v5e's scoped default is only 16 MiB; keep TB*Leff ≥ ~256 rows.
    out_pad = pl.pallas_call(
        make_kernel(B, Leff, T_TOT, NUM_CATEGORIES, twoC),
        out_shape=jax.ShapeDtypeStruct((B, OUT_LANES), jnp.float32),
        in_specs=[vmem, vmem, vmem],
        out_specs=vmem,
    )(codes, wcomb, fc_pack)
    return out_pad[:, :NUM_CLASSES]


# ------------------------------ pure-JAX reference -----------------------------
def reference_forward(X, params):
    """Pure-JAX reference replicating the PyTorch forward (eval mode)."""
    emb_table, (w3, b3), (w4, b4), fcw, fcb = params
    B, L = X.shape
    emb = emb_table[X]                                            # (B, L, E)
    feats = []
    for (w, b, k) in [(w3, b3, KERNEL_SIZES[0]), (w4, b4, KERNEL_SIZES[1])]:
        pad = k // 2
        xp = jnp.pad(emb, ((0, 0), (pad, pad), (0, 0)))
        L_out = _conv_out_len(L, k)
        acc = jnp.zeros((B, L_out, CONV_OUT), jnp.float32)
        for tap in range(k):
            acc = acc + jnp.einsum('ble,ec->blc', xp[:, tap:tap + L_out, :], w[tap])
        h = jax.nn.relu(acc + b[None, :, :])
        eff = 2 * (L_out // 2)
        feats.append(jnp.max(h[:, :eff, :], axis=1))              # (B, C)
    cat = jnp.concatenate(feats, axis=1)                          # (B, 2C)
    return cat @ fcw + fcb


def init_params(key):
    k_emb, k_w3, k_b3, k_w4, k_b4, k_fw, k_fb = jax.random.split(key, 7)
    emb_table = jax.random.normal(k_emb, (NUM_CATEGORIES, EMBED_DIM), jnp.float32) * 0.5
    # Conv weight layout here is (k, E, C); PyTorch Conv1d (C_out, C_in, k) maps via
    # w.transpose(2, 1, 0) and bias reshaped to (1, C).
    w3 = jax.random.normal(k_w3, (KERNEL_SIZES[0], EMBED_DIM, CONV_OUT), jnp.float32) * 0.2
    b3 = jax.random.normal(k_b3, (1, CONV_OUT), jnp.float32) * 0.1
    w4 = jax.random.normal(k_w4, (KERNEL_SIZES[1], EMBED_DIM, CONV_OUT), jnp.float32) * 0.2
    b4 = jax.random.normal(k_b4, (1, CONV_OUT), jnp.float32) * 0.1
    fcw = jax.random.normal(k_fw, (CONV_OUT * len(KERNEL_SIZES), NUM_CLASSES), jnp.float32) * 0.2
    fcb = jax.random.normal(k_fb, (1, NUM_CLASSES), jnp.float32) * 0.1
    return emb_table, (w3, b3), (w4, b4), fcw, fcb


if __name__ == "__main__":
    key = jax.random.PRNGKey(0)
    k_params, k_x = jax.random.split(key)
    params = init_params(k_params)

    # One-time packing, hoisted out of the per-call path.
    wcomb, fc_pack = jax.tree_util.tree_map(jax.block_until_ready, pack_params(params))

    X = jax.random.randint(k_x, (BATCH, SEQ_LEN), 0, NUM_CATEGORIES, dtype=jnp.int32)

    out = jax.block_until_ready(cnn2l_forward(X, wcomb, fc_pack))
    ref = jax.block_until_ready(reference_forward(X, params))

    assert out.shape == (BATCH, NUM_CLASSES)
    assert jnp.allclose(out, ref, atol=1e-4, rtol=1e-4), (out, ref)

    print("KERNEL_OK")
</pallas_src>

<mosaic_0001>
module attributes {stable_mosaic.version = 11 : i64} {
  func.func @kernel(%arg0: memref<8x32x1xi32, #tpu.memory_space<vmem>>, %arg1: memref<8x20x32xf32, #tpu.memory_space<vmem>>, %arg2: memref<33x128xf32, #tpu.memory_space<vmem>>, %arg3: memref<2x128xf32, #tpu.memory_space<vmem>>) attributes {dimension_semantics = [], scalar_prefetch = 0 : i64, scratch_operands = 0 : i64, tpu.core_type = #tpu.core_type<tc>} {
    %0 = tpu.iota {dimensions = array<i32: 1>} : vector<32x20xi32>
    %cst = arith.constant 0.000000e+00 : f32
    %1 = vector.broadcast %cst : f32 to vector<32x32xf32>
    %c0 = arith.constant 0 : index
    %c0_0 = arith.constant 0 : index
    %c0_1 = arith.constant 0 : index
    %2 = vector.load %arg0[%c0, %c0_0, %c0_1] : memref<8x32x1xi32, #tpu.memory_space<vmem>>, vector<1x32x1xi32>
    %3 = vector.shape_cast %2 : vector<1x32x1xi32> to vector<32x1xi32>
    %4 = vector.broadcast %3 : vector<32x1xi32> to vector<32x20xi32>
    %5 = arith.cmpi eq, %4, %0 : vector<32x20xi32>
    %6 = arith.extui %5 : vector<32x20xi1> to vector<32x20xi32>
    %7 = arith.sitofp %6 : vector<32x20xi32> to vector<32x20xf32>
    %c0_2 = arith.constant 0 : index
    %c0_3 = arith.constant 0 : index
    %c0_4 = arith.constant 0 : index
    %8 = vector.load %arg1[%c0_2, %c0_3, %c0_4] : memref<8x20x32xf32, #tpu.memory_space<vmem>>, vector<1x20x32xf32>
    %9 = vector.shape_cast %8 : vector<1x20x32xf32> to vector<20x32xf32>
    %cst_5 = arith.constant dense<0.000000e+00> : vector<32x32xf32>
    %10 = tpu.matmul %7, %9, %cst_5 {dimension_numbers = #tpu.dot_dimension_numbers<[1], [0], [0], [1], [0, 0, 1, 1], [], []>} : vector<32x20xf32>, vector<20x32xf32>, vector<32x32xf32> -> vector<32x32xf32>
    %11 = arith.addf %1, %10 : vector<32x32xf32>
    %c1 = arith.constant 1 : index
    %c0_6 = arith.constant 0 : index
    %c0_7 = arith.constant 0 : index
    %12 = vector.load %arg0[%c1, %c0_6, %c0_7] : memref<8x32x1xi32, #tpu.memory_space<vmem>>, vector<1x32x1xi32>
    %13 = vector.shape_cast %12 : vector<1x32x1xi32> to vector<32x1xi32>
    %14 = vector.broadcast %13 : vector<32x1xi32> to vector<32x20xi32>
    %15 = arith.cmpi eq, %14, %0 : vector<32x20xi32>
    %16 = arith.extui %15 : vector<32x20xi1> to vector<32x20xi32>
    %17 = arith.sitofp %16 : vector<32x20xi32> to vector<32x20xf32>
    %c1_8 = arith.constant 1 : index
    %c0_9 = arith.constant 0 : index
    %c0_10 = arith.constant 0 : index
    %18 = vector.load %arg1[%c1_8, %c0_9, %c0_10] : memref<8x20x32xf32, #tpu.memory_space<vmem>>, vector<1x20x32xf32>
    %19 = vector.shape_cast %18 : vector<1x20x32xf32> to vector<20x32xf32>
    %cst_11 = arith.constant dense<0.000000e+00> : vector<32x32xf32>
    %20 = tpu.matmul %17, %19, %cst_11 {dimension_numbers = #tpu.dot_dimension_numbers<[1], [0], [0], [1], [0, 0, 1, 1], [], []>} : vector<32x20xf32>, vector<20x32xf32>, vector<32x32xf32> -> vector<32x32xf32>
    %21 = arith.addf %11, %20 : vector<32x32xf32>
    %c2 = arith.constant 2 : index
    %c0_12 = arith.constant 0 : index
    %c0_13 = arith.constant 0 : index
    %22 = vector.load %arg0[%c2, %c0_12, %c0_13] : memref<8x32x1xi32, #tpu.memory_space<vmem>>, vector<1x32x1xi32>
    %23 = vector.shape_cast %22 : vector<1x32x1xi32> to vector<32x1xi32>
    %24 = vector.broadcast %23 : vector<32x1xi32> to vector<32x20xi32>
    %25 = arith.cmpi eq, %24, %0 : vector<32x20xi32>
    %26 = arith.extui %25 : vector<32x20xi1> to vector<32x20xi32>
    %27 = arith.sitofp %26 : vector<32x20xi32> to vector<32x20xf32>
    %c2_14 = arith.constant 2 : index
    %c0_15 = arith.constant 0 : index
    %c0_16 = arith.constant 0 : index
    %28 = vector.load %arg1[%c2_14, %c0_15, %c0_16] : memref<8x20x32xf32, #tpu.memory_space<vmem>>, vector<1x20x32xf32>
    %29 = vector.shape_cast %28 : vector<1x20x32xf32> to vector<20x32xf32>
    %cst_17 = arith.constant dense<0.000000e+00> : vector<32x32xf32>
    %30 = tpu.matmul %27, %29, %cst_17 {dimension_numbers = #tpu.dot_dimension_numbers<[1], [0], [0], [1], [0, 0, 1, 1], [], []>} : vector<32x20xf32>, vector<20x32xf32>, vector<32x32xf32> -> vector<32x32xf32>
    %31 = arith.addf %21, %30 : vector<32x32xf32>
    %c3 = arith.constant 3 : index
    %c0_18 = arith.constant 0 : index
    %c0_19 = arith.constant 0 : index
    %32 = vector.load %arg0[%c3, %c0_18, %c0_19] : memref<8x32x1xi32, #tpu.memory_space<vmem>>, vector<1x32x1xi32>
    %33 = vector.shape_cast %32 : vector<1x32x1xi32> to vector<32x1xi32>
    %34 = vector.broadcast %33 : vector<32x1xi32> to vector<32x20xi32>
    %35 = arith.cmpi eq, %34, %0 : vector<32x20xi32>
    %36 = arith.extui %35 : vector<32x20xi1> to vector<32x20xi32>
    %37 = arith.sitofp %36 : vector<32x20xi32> to vector<32x20xf32>
    %c3_20 = arith.constant 3 : index
    %c0_21 = arith.constant 0 : index
    %c0_22 = arith.constant 0 : index
    %38 = vector.load %arg1[%c3_20, %c0_21, %c0_22] : memref<8x20x32xf32, #tpu.memory_space<vmem>>, vector<1x20x32xf32>
    %39 = vector.shape_cast %38 : vector<1x20x32xf32> to vector<20x32xf32>
    %cst_23 = arith.constant dense<0.000000e+00> : vector<32x32xf32>
    %40 = tpu.matmul %37, %39, %cst_23 {dimension_numbers = #tpu.dot_dimension_numbers<[1], [0], [0], [1], [0, 0, 1, 1], [], []>} : vector<32x20xf32>, vector<20x32xf32>, vector<32x32xf32> -> vector<32x32xf32>
    %41 = arith.addf %31, %40 : vector<32x32xf32>
    %c4 = arith.constant 4 : index
    %c0_24 = arith.constant 0 : index
    %c0_25 = arith.constant 0 : index
    %42 = vector.load %arg0[%c4, %c0_24, %c0_25] : memref<8x32x1xi32, #tpu.memory_space<vmem>>, vector<1x32x1xi32>
    %43 = vector.shape_cast %42 : vector<1x32x1xi32> to vector<32x1xi32>
    %44 = vector.broadcast %43 : vector<32x1xi32> to vector<32x20xi32>
    %45 = arith.cmpi eq, %44, %0 : vector<32x20xi32>
    %46 = arith.extui %45 : vector<32x20xi1> to vector<32x20xi32>
    %47 = arith.sitofp %46 : vector<32x20xi32> to vector<32x20xf32>
    %c4_26 = arith.constant 4 : index
    %c0_27 = arith.constant 0 : index
    %c0_28 = arith.constant 0 : index
    %48 = vector.load %arg1[%c4_26, %c0_27, %c0_28] : memref<8x20x32xf32, #tpu.memory_space<vmem>>, vector<1x20x32xf32>
    %49 = vector.shape_cast %48 : vector<1x20x32xf32> to vector<20x32xf32>
    %cst_29 = arith.constant dense<0.000000e+00> : vector<32x32xf32>
    %50 = tpu.matmul %47, %49, %cst_29 {dimension_numbers = #tpu.dot_dimension_numbers<[1], [0], [0], [1], [0, 0, 1, 1], [], []>} : vector<32x20xf32>, vector<20x32xf32>, vector<32x32xf32> -> vector<32x32xf32>
    %51 = arith.addf %41, %50 : vector<32x32xf32>
    %c5 = arith.constant 5 : index
    %c0_30 = arith.constant 0 : index
    %c0_31 = arith.constant 0 : index
    %52 = vector.load %arg0[%c5, %c0_30, %c0_31] : memref<8x32x1xi32, #tpu.memory_space<vmem>>, vector<1x32x1xi32>
    %53 = vector.shape_cast %52 : vector<1x32x1xi32> to vector<32x1xi32>
    %54 = vector.broadcast %53 : vector<32x1xi32> to vector<32x20xi32>
    %55 = arith.cmpi eq, %54, %0 : vector<32x20xi32>
    %56 = arith.extui %55 : vector<32x20xi1> to vector<32x20xi32>
    %57 = arith.sitofp %56 : vector<32x20xi32> to vector<32x20xf32>
    %c5_32 = arith.constant 5 : index
    %c0_33 = arith.constant 0 : index
    %c0_34 = arith.constant 0 : index
    %58 = vector.load %arg1[%c5_32, %c0_33, %c0_34] : memref<8x20x32xf32, #tpu.memory_space<vmem>>, vector<1x20x32xf32>
    %59 = vector.shape_cast %58 : vector<1x20x32xf32> to vector<20x32xf32>
    %cst_35 = arith.constant dense<0.000000e+00> : vector<32x32xf32>
    %60 = tpu.matmul %57, %59, %cst_35 {dimension_numbers = #tpu.dot_dimension_numbers<[1], [0], [0], [1], [0, 0, 1, 1], [], []>} : vector<32x20xf32>, vector<20x32xf32>, vector<32x32xf32> -> vector<32x32xf32>
    %61 = arith.addf %51, %60 : vector<32x32xf32>
    %c6 = arith.constant 6 : index
    %c0_36 = arith.constant 0 : index
    %c0_37 = arith.constant 0 : index
    %62 = vector.load %arg0[%c6, %c0_36, %c0_37] : memref<8x32x1xi32, #tpu.memory_space<vmem>>, vector<1x32x1xi32>
    %63 = vector.shape_cast %62 : vector<1x32x1xi32> to vector<32x1xi32>
    %64 = vector.broadcast %63 : vector<32x1xi32> to vector<32x20xi32>
    %65 = arith.cmpi eq, %64, %0 : vector<32x20xi32>
    %66 = arith.extui %65 : vector<32x20xi1> to vector<32x20xi32>
    %67 = arith.sitofp %66 : vector<32x20xi32> to vector<32x20xf32>
    %c6_38 = arith.constant 6 : index
    %c0_39 = arith.constant 0 : index
    %c0_40 = arith.constant 0 : index
    %68 = vector.load %arg1[%c6_38, %c0_39, %c0_40] : memref<8x20x32xf32, #tpu.memory_space<vmem>>, vector<1x20x32xf32>
    %69 = vector.shape_cast %68 : vector<1x20x32xf32> to vector<20x32xf32>
    %cst_41 = arith.constant dense<0.000000e+00> : vector<32x32xf32>
    %70 = tpu.matmul %67, %69, %cst_41 {dimension_numbers = #tpu.dot_dimension_numbers<[1], [0], [0], [1], [0, 0, 1, 1], [], []>} : vector<32x20xf32>, vector<20x32xf32>, vector<32x32xf32> -> vector<32x32xf32>
    %71 = arith.addf %61, %70 : vector<32x32xf32>
    %c7 = arith.constant 7 : index
    %c0_42 = arith.constant 0 : index
    %c0_43 = arith.constant 0 : index
    %72 = vector.load %arg0[%c7, %c0_42, %c0_43] : memref<8x32x1xi32, #tpu.memory_space<vmem>>, vector<1x32x1xi32>
    %73 = vector.shape_cast %72 : vector<1x32x1xi32> to vector<32x1xi32>
    %74 = vector.broadcast %73 : vector<32x1xi32> to vector<32x20xi32>
    %75 = arith.cmpi eq, %74, %0 : vector<32x20xi32>
    %76 = arith.extui %75 : vector<32x20xi1> to vector<32x20xi32>
    %77 = arith.sitofp %76 : vector<32x20xi32> to vector<32x20xf32>
    %c7_44 = arith.constant 7 : index
    %c0_45 = arith.constant 0 : index
    %c0_46 = arith.constant 0 : index
    %78 = vector.load %arg1[%c7_44, %c0_45, %c0_46] : memref<8x20x32xf32, #tpu.memory_space<vmem>>, vector<1x20x32xf32>
    %79 = vector.shape_cast %78 : vector<1x20x32xf32> to vector<20x32xf32>
    %cst_47 = arith.constant dense<0.000000e+00> : vector<32x32xf32>
    %80 = tpu.matmul %77, %79, %cst_47 {dimension_numbers = #tpu.dot_dimension_numbers<[1], [0], [0], [1], [0, 0, 1, 1], [], []>} : vector<32x20xf32>, vector<20x32xf32>, vector<32x32xf32> -> vector<32x32xf32>
    %81 = arith.addf %71, %80 : vector<32x32xf32>
    %cst_48 = arith.constant 0.000000e+00 : f32
    %82 = vector.broadcast %cst_48 : f32 to vector<32x32xf32>
    %83 = arith.maximumf %81, %82 : vector<32x32xf32>
    %84 = vector.shape_cast %83 : vector<32x32xf32> to vector<2x16x32xf32>
    %cst_49 = arith.constant dense<0xFF800000> : vector<2x32xf32>
    %85 = vector.multi_reduction <maximumf>, %84, %cst_49 [1] : vector<2x16x32xf32> to vector<2x32xf32>
    %c0_50 = arith.constant 0 : index
    %c0_51 = arith.constant 0 : index
    %86 = vector.load %arg2[%c0_50, %c0_51] : memref<33x128xf32, #tpu.memory_space<vmem>>, vector<33x128xf32>
    %87 = vector.extract_strided_slice %86 {offsets = [0, 0], sizes = [32, 128], strides = [1, 1]} : vector<33x128xf32> to vector<32x128xf32>
    %cst_52 = arith.constant dense<0.000000e+00> : vector<2x128xf32>
    %88 = tpu.matmul %85, %87, %cst_52 {dimension_numbers = #tpu.dot_dimension_numbers<[1], [0], [0], [1], [0, 0, 1, 1], [], []>} : vector<2x32xf32>, vector<32x128xf32>, vector<2x128xf32> -> vector<2x128xf32>
    %89 = vector.extract_strided_slice %86 {offsets = [32, 0], sizes = [1, 128], strides = [1, 1]} : vector<33x128xf32> to vector<1x128xf32>
    %90 = vector.broadcast %89 : vector<1x128xf32> to vector<2x128xf32>
    %91 = arith.addf %88, %90 : vector<2x128xf32>
    %c0_53 = arith.constant 0 : index
    %c0_54 = arith.constant 0 : index
    %92 = vector.load %arg3[%c0_53, %c0_54] : memref<2x128xf32, #tpu.memory_space<vmem>>, vector<2x128xf32>
    tpu.vector_store %arg3[%c0_53, %c0_54], %91 {strides = array<i32>} : memref<2x128xf32, #tpu.memory_space<vmem>>, vector<2x128xf32>,
    return
  }
}

</mosaic_0001>

<llo_original>
// kernel: cnn2l_forward.1
$region0: #{cnn2l_forward.1}
  #allocation0 [shape = 'u32[]', space=smem, size = 0x4, offset = 0x4, fixed_abs, tag = 'smem constant byte address 0x4 - core index']
  #allocation1 [shape = 'u32[72,128]{1,0:T(1,128)}', space=vmem, size = 0x9000, scoped, tag = 'internal scratch']
  %s0 = inlined_call_operand.vmem [shape: s32[8,32,1], index: 0, kind: input, shape index: {}]
  %s1 = inlined_call_operand.vmem [shape: f32[8,20,32], index: 1, kind: input, shape index: {}]
  %s2 = inlined_call_operand.vmem [shape: f32[33,128], index: 2, kind: input, shape index: {}]
  %s3 = inlined_call_operand.hbm [shape: f32[2,128], index: 3, kind: output, shape index: {}]
  %s4 = sld [smem:[#allocation0]]
  $region22: #{cnn2l_forward.1} parent=0
    _
  %s6 = ssub.s32 1, %s4
  %s7 = scalar_select 0, %s6, %s4
  $region1: #{cnn2l_forward.1} parent=0
    #allocation2 [shape = 'u8[1024]{0}', space=vmem, size = 0x400, scoped, tag = 'output window, operand 0, single buffered']
    #allocation3 [shape = 's32[1]{0}', space=sflag, size = 0x4, scoped, tag = 'scoped memory for cnn2l_forward.1']
    %8 = vsyncpa [#allocation3], 0
    // Predicated region
    $region2: #{cnn2l_forward.1} parent=1 // pred_check
      _
    $region3: #{cnn2l_forward.1} parent=1 // pred_check_branch
      %10 = sbr.rel (0) target = $region5
    $region4: #{cnn2l_forward.1} parent=1 // pred_region
      _
    $region5: #{cnn2l_forward.1} parent=1 // pred_fallthru
      _
    // Predicated region
    $region6: #{cnn2l_forward.1} parent=1 // pred_check
      _
    $region7: #{cnn2l_forward.1} parent=1 // pred_check_branch
      %12 = sbr.rel (0) target = $region9
    $region8: #{cnn2l_forward.1} parent=1 // pred_region
      _
    $region9: #{cnn2l_forward.1} parent=1 // pred_fallthru
      _
    // Predicated region
    $region10: #{cnn2l_forward.1} parent=1 // pred_check
      _
    $region11: #{cnn2l_forward.1} parent=1 // pred_check_branch
      %14 = sbr.rel (0) target = $region13
    $region12: #{cnn2l_forward.1} parent=1 // pred_region
      _
    $region13: #{cnn2l_forward.1} parent=1 // pred_fallthru
      _
    %v15 = vlaneseq
    %v16 = vand.u32 %v15, 127
    %v17 = vld [vmem:[%s0] sm:$0xff]
    %v18 = vld [vmem:[%s0 + $0x8] sm:$0xff]
    %v19 = vld [vmem:[%s0 + $0x10] sm:$0xff]
    %v20 = vld [vmem:[%s0 + $0x18] sm:$0xff]
    %21 = vset.pattern.permute.xlu0 0
    %22 = vperm.xlu0 %21, %v17
    %v23 = vpop.permute.xlu0 %22
    %24 = vset.pattern.permute.xlu0 0
    %25 = vperm.xlu0 %24, %v18
    %v26 = vpop.permute.xlu0 %25
    %27 = vset.pattern.permute.xlu0 0
    %28 = vperm.xlu0 %27, %v19
    %v29 = vpop.permute.xlu0 %28
    %30 = vset.pattern.permute.xlu0 0
    %31 = vperm.xlu0 %30, %v20
    %v32 = vpop.permute.xlu0 %31
    %vm33 = vcmp.eq.s32.totalorder %v23, %v16
    %vm34 = vcmp.eq.s32.totalorder %v26, %v16
    %vm35 = vcmp.eq.s32.totalorder %v29, %v16
    %vm36 = vcmp.eq.s32.totalorder %v32, %v16
    %v37 = vsel %vm33, 1, 0
    %v38 = vsel %vm34, 1, 0
    %v39 = vsel %vm35, 1, 0
    %v40 = vsel %vm36, 1, 0
    %v41 = vcvt.s32.f32 %v37
    %v42 = vcvt.s32.f32 %v38
    %v43 = vcvt.s32.f32 %v39
    %v44 = vcvt.s32.f32 %v40
    %v45 = vld [vmem:[%s1] sm:$0xff]
    %v46 = vld [vmem:[%s1 + $0x8] sm:$0xff]
    %v47 = vld [vmem:[%s1 + $0x10] sm:$0xf]
    %s48 = scalar_lea.vmem %s0, 32
    %v49 = vld [vmem:[%s48] sm:$0xff]
    %v50 = vld [vmem:[%s48 + $0x8] sm:$0xff]
    %v51 = vld [vmem:[%s48 + $0x10] sm:$0xff]
    %v52 = vld [vmem:[%s48 + $0x18] sm:$0xff]
    %53 = vset.pattern.permute.xlu0 0
    %54 = vperm.xlu0 %53, %v49
    %v55 = vpop.permute.xlu0 %54
    %56 = vset.pattern.permute.xlu0 0
    %57 = vperm.xlu0 %56, %v50
    %v58 = vpop.permute.xlu0 %57
    %59 = vset.pattern.permute.xlu0 0
    %60 = vperm.xlu0 %59, %v51
    %v61 = vpop.permute.xlu0 %60
    %62 = vset.pattern.permute.xlu0 0
    %63 = vperm.xlu0 %62, %v52
    %v64 = vpop.permute.xlu0 %63
    %vm65 = vcmp.eq.s32.totalorder %v55, %v16
    %vm66 = vcmp.eq.s32.totalorder %v58, %v16
    %vm67 = vcmp.eq.s32.totalorder %v61, %v16
    %vm68 = vcmp.eq.s32.totalorder %v64, %v16
    %v69 = vsel %vm65, 1, 0
    %v70 = vsel %vm66, 1, 0
    %v71 = vsel %vm67, 1, 0
    %v72 = vsel %vm68, 1, 0
    %v73 = vcvt.s32.f32 %v69
    %v74 = vcvt.s32.f32 %v70
    %v75 = vcvt.s32.f32 %v71
    %v76 = vcvt.s32.f32 %v72
    %s77 = scalar_lea.vmem %s1, 24
    %v78 = vld [vmem:[%s77] sm:$0xff]
    %v79 = vld [vmem:[%s77 + $0x8] sm:$0xff]
    %v80 = vld [vmem:[%s77 + $0x10] sm:$0xf]
    %vm81 = vcmask 162816
    %v83 = vsel %vm81, %v73, 0
    %v86 = vsel %vm81, %v74, 0
    %v89 = vsel %vm81, %v75, 0
    %v92 = vsel %vm81, %v76, 0
    %vm94 = vcmask 1043456
    %v96 = vsel %vm94, %v80, 0
    %98 = vmatpush.msra.mxu0 0.0
    %99 = vmatpush.msra.mxu0 0.0
    %100 = vmatpush.msra.mxu0 0.0
    %101 = vmatpush.msra.mxu0 0.0
    %102 = vmatpush.msra.mxu0 0.0
    %103 = vmatpush.msra.mxu0 0.0
    %104 = vmatpush.msra.mxu0 0.0
    %105 = vmatpush.msra.mxu0 0.0
    %106 = vmatpush.msra.mxu0 0.0
    %107 = vmatpush.msra.mxu0 0.0
    %108 = vmatpush.msra.mxu0 0.0
    %109 = vmatpush.msra.mxu0 0.0
    %110 = vmatpush.msra.mxu0 0.0
    %111 = vmatpush.msra.mxu0 %v96
    %112 = vmatpush.msra.mxu0 %v79
    %113 = vmatpush.msra.mxu0 %v78
    %114 = vmatmul.f32.gmra.mxu0 %v83
    %v115 = vpop.f32.mrf.mxu0
    %v116 = vadd.f32 0.0, %v115
    %117 = vmatmul.f32.gmra.mxu0 %v86
    %v118 = vpop.f32.mrf.mxu0
    %v119 = vadd.f32 0.0, %v118
    %120 = vmatmul.f32.gmra.mxu0 %v89
    %v121 = vpop.f32.mrf.mxu0
    %v122 = vadd.f32 0.0, %v121
    %123 = vmatmul.f32.gmra.mxu0 %v92
    %v124 = vpop.f32.mrf.mxu0
    %v125 = vadd.f32 0.0, %v124
    %126 = vdwg.mxu0
    %v128 = vsel %vm81, %v41, 0
    %v131 = vsel %vm81, %v42, 0
    %v134 = vsel %vm81, %v43, 0
    %v137 = vsel %vm81, %v44, 0
    %v140 = vsel %vm94, %v47, 0
    %142 = vmatpush.msra.mxu0 0.0
    %143 = vmatpush.msra.mxu0 0.0
    %144 = vmatpush.msra.mxu0 0.0
    %145 = vmatpush.msra.mxu0 0.0
    %146 = vmatpush.msra.mxu0 0.0
    %147 = vmatpush.msra.mxu0 0.0
    %148 = vmatpush.msra.mxu0 0.0
    %149 = vmatpush.msra.mxu0 0.0
    %150 = vmatpush.msra.mxu0 0.0
    %151 = vmatpush.msra.mxu0 0.0
    %152 = vmatpush.msra.mxu0 0.0
    %153 = vmatpush.msra.mxu0 0.0
    %154 = vmatpush.msra.mxu0 0.0
    %155 = vmatpush.msra.mxu0 %v140
    %156 = vmatpush.msra.mxu0 %v46
    %157 = vmatpush.msra.mxu0 %v45
    %158 = vmatmul.f32.gmra.mxu0 %v128
    %v159 = vpop.f32.mrf.mxu0
    %v160 = vadd.f32 %v116, %v159
    %161 = vmatmul.f32.gmra.mxu0 %v131
    %v162 = vpop.f32.mrf.mxu0
    %v163 = vadd.f32 %v119, %v162
    %164 = vmatmul.f32.gmra.mxu0 %v134
    %v165 = vpop.f32.mrf.mxu0
    %v166 = vadd.f32 %v122, %v165
    %167 = vmatmul.f32.gmra.mxu0 %v137
    %v168 = vpop.f32.mrf.mxu0
    %v169 = vadd.f32 %v125, %v168
    %170 = vdwg.mxu0
    %s171 = scalar_lea.vmem %s0, 64
    %v172 = vld [vmem:[%s171] sm:$0xff]
    %v173 = vld [vmem:[%s171 + $0x8] sm:$0xff]
    %v174 = vld [vmem:[%s171 + $0x10] sm:$0xff]
    %v175 = vld [vmem:[%s171 + $0x18] sm:$0xff]
    %176 = vset.pattern.permute.xlu0 0
    %177 = vperm.xlu0 %176, %v172
    %v178 = vpop.permute.xlu0 %177
    %179 = vset.pattern.permute.xlu0 0
    %180 = vperm.xlu0 %179, %v173
    %v181 = vpop.permute.xlu0 %180
    %182 = vset.pattern.permute.xlu0 0
    %183 = vperm.xlu0 %182, %v174
    %v184 = vpop.permute.xlu0 %183
    %185 = vset.pattern.permute.xlu0 0
    %186 = vperm.xlu0 %185, %v175
    %v187 = vpop.permute.xlu0 %186
    %vm188 = vcmp.eq.s32.totalorder %v178, %v16
    %vm189 = vcmp.eq.s32.totalorder %v181, %v16
    %vm190 = vcmp.eq.s32.totalorder %v184, %v16
    %vm191 = vcmp.eq.s32.totalorder %v187, %v16
    %v192 = vsel %vm188, 1, 0
    %v193 = vsel %vm189, 1, 0
    %v194 = vsel %vm190, 1, 0
    %v195 = vsel %vm191, 1, 0
    %v196 = vcvt.s32.f32 %v192
    %v197 = vcvt.s32.f32 %v193
    %v198 = vcvt.s32.f32 %v194
    %v199 = vcvt.s32.f32 %v195
    %s200 = scalar_lea.vmem %s1, 48
    %v201 = vld [vmem:[%s200] sm:$0xff]
    %v202 = vld [vmem:[%s200 + $0x8] sm:$0xff]
    %v203 = vld [vmem:[%s200 + $0x10] sm:$0xf]
    %v205 = vsel %vm81, %v196, 0
    %v208 = vsel %vm81, %v197, 0
    %v211 = vsel %vm81, %v198, 0
    %v214 = vsel %vm81, %v199, 0
    %v217 = vsel %vm94, %v203, 0
    %219 = vmatpush.msra.mxu0 0.0
    %220 = vmatpush.msra.mxu0 0.0
    %221 = vmatpush.msra.mxu0 0.0
    %222 = vmatpush.msra.mxu0 0.0
    %223 = vmatpush.msra.mxu0 0.0
    %224 = vmatpush.msra.mxu0 0.0
    %225 = vmatpush.msra.mxu0 0.0
    %226 = vmatpush.msra.mxu0 0.0
    %227 = vmatpush.msra.mxu0 0.0
    %228 = vmatpush.msra.mxu0 0.0
    %229 = vmatpush.msra.mxu0 0.0
    %230 = vmatpush.msra.mxu0 0.0
    %231 = vmatpush.msra.mxu0 0.0
    %232 = vmatpush.msra.mxu0 %v217
    %233 = vmatpush.msra.mxu0 %v202
    %234 = vmatpush.msra.mxu0 %v201
    %235 = vmatmul.f32.gmra.mxu0 %v205
    %v236 = vpop.f32.mrf.mxu0
    %v237 = vadd.f32 0.0, %v236
    %238 = vmatmul.f32.gmra.mxu0 %v208
    %v239 = vpop.f32.mrf.mxu0
    %v240 = vadd.f32 0.0, %v239
    %241 = vmatmul.f32.gmra.mxu0 %v211
    %v242 = vpop.f32.mrf.mxu0
    %v243 = vadd.f32 0.0, %v242
    %244 = vmatmul.f32.gmra.mxu0 %v214
    %v245 = vpop.f32.mrf.mxu0
    %v246 = vadd.f32 0.0, %v245
    %247 = vdwg.mxu0
    %v248 = vadd.f32 %v160, %v237
    %v249 = vadd.f32 %v163, %v240
    %v250 = vadd.f32 %v166, %v243
    %v251 = vadd.f32 %v169, %v246
    %s252 = scalar_lea.vmem %s0, 96
    %v253 = vld [vmem:[%s252] sm:$0xff]
    %v254 = vld [vmem:[%s252 + $0x8] sm:$0xff]
    %v255 = vld [vmem:[%s252 + $0x10] sm:$0xff]
    %v256 = vld [vmem:[%s252 + $0x18] sm:$0xff]
    %257 = vset.pattern.permute.xlu0 0
    %258 = vperm.xlu0 %257, %v253
    %v259 = vpop.permute.xlu0 %258
    %260 = vset.pattern.permute.xlu0 0
    %261 = vperm.xlu0 %260, %v254
    %v262 = vpop.permute.xlu0 %261
    %263 = vset.pattern.permute.xlu0 0
    %264 = vperm.xlu0 %263, %v255
    %v265 = vpop.permute.xlu0 %264
    %266 = vset.pattern.permute.xlu0 0
    %267 = vperm.xlu0 %266, %v256
    %v268 = vpop.permute.xlu0 %267
    %vm269 = vcmp.eq.s32.totalorder %v259, %v16
    %vm270 = vcmp.eq.s32.totalorder %v262, %v16
    %vm271 = vcmp.eq.s32.totalorder %v265, %v16
    %vm272 = vcmp.eq.s32.totalorder %v268, %v16
    %v273 = vsel %vm269, 1, 0
    %v274 = vsel %vm270, 1, 0
    %v275 = vsel %vm271, 1, 0
    %v276 = vsel %vm272, 1, 0
    %v277 = vcvt.s32.f32 %v273
    %v278 = vcvt.s32.f32 %v274
    %v279 = vcvt.s32.f32 %v275
    %v280 = vcvt.s32.f32 %v276
    %s281 = scalar_lea.vmem %s1, 72
    %v282 = vld [vmem:[%s281] sm:$0xff]
    %v283 = vld [vmem:[%s281 + $0x8] sm:$0xff]
    %v284 = vld [vmem:[%s281 + $0x10] sm:$0xf]
    %v286 = vsel %vm81, %v277, 0
    %v289 = vsel %vm81, %v278, 0
    %v292 = vsel %vm81, %v279, 0
    %v295 = vsel %vm81, %v280, 0
    %v298 = vsel %vm94, %v284, 0
    %300 = vmatpush.msra.mxu0 0.0
    %301 = vmatpush.msra.mxu0 0.0
    %302 = vmatpush.msra.mxu0 0.0
    %303 = vmatpush.msra.mxu0 0.0
    %304 = vmatpush.msra.mxu0 0.0
    %305 = vmatpush.msra.mxu0 0.0
    %306 = vmatpush.msra.mxu0 0.0
    %307 = vmatpush.msra.mxu0 0.0
    %308 = vmatpush.msra.mxu0 0.0
    %309 = vmatpush.msra.mxu0 0.0
    %310 = vmatpush.msra.mxu0 0.0
    %311 = vmatpush.msra.mxu0 0.0
    %312 = vmatpush.msra.mxu0 0.0
    %313 = vmatpush.msra.mxu0 %v298
    %314 = vmatpush.msra.mxu0 %v283
    %315 = vmatpush.msra.mxu0 %v282
    %316 = vmatmul.f32.gmra.mxu0 %v286
    %v317 = vpop.f32.mrf.mxu0
    %v318 = vadd.f32 0.0, %v317
    %319 = vmatmul.f32.gmra.mxu0 %v289
    %v320 = vpop.f32.mrf.mxu0
    %v321 = vadd.f32 0.0, %v320
    %322 = vmatmul.f32.gmra.mxu0 %v292
    %v323 = vpop.f32.mrf.mxu0
    %v324 = vadd.f32 0.0, %v323
    %325 = vmatmul.f32.gmra.mxu0 %v295
    %v326 = vpop.f32.mrf.mxu0
    %v327 = vadd.f32 0.0, %v326
    %328 = vdwg.mxu0
    %v329 = vadd.f32 %v248, %v318
    %v330 = vadd.f32 %v249, %v321
    %v331 = vadd.f32 %v250, %v324
    %v332 = vadd.f32 %v251, %v327
    %s333 = scalar_lea.vmem %s0, 128
    %v334 = vld [vmem:[%s333] sm:$0xff]
    %v335 = vld [vmem:[%s333 + $0x8] sm:$0xff]
    %v336 = vld [vmem:[%s333 + $0x10] sm:$0xff]
    %v337 = vld [vmem:[%s333 + $0x18] sm:$0xff]
    %338 = vset.pattern.permute.xlu0 0
    %339 = vperm.xlu0 %338, %v334
    %v340 = vpop.permute.xlu0 %339
    %341 = vset.pattern.permute.xlu0 0
    %342 = vperm.xlu0 %341, %v335
    %v343 = vpop.permute.xlu0 %342
    %344 = vset.pattern.permute.xlu0 0
    %345 = vperm.xlu0 %344, %v336
    %v346 = vpop.permute.xlu0 %345
    %347 = vset.pattern.permute.xlu0 0
    %348 = vperm.xlu0 %347, %v337
    %v349 = vpop.permute.xlu0 %348
    %vm350 = vcmp.eq.s32.totalorder %v340, %v16
    %vm351 = vcmp.eq.s32.totalorder %v343, %v16
    %vm352 = vcmp.eq.s32.totalorder %v346, %v16
    %vm353 = vcmp.eq.s32.totalorder %v349, %v16
    %v354 = vsel %vm350, 1, 0
    %v355 = vsel %vm351, 1, 0
    %v356 = vsel %vm352, 1, 0
    %v357 = vsel %vm353, 1, 0
    %v358 = vcvt.s32.f32 %v354
    %v359 = vcvt.s32.f32 %v355
    %v360 = vcvt.s32.f32 %v356
    %v361 = vcvt.s32.f32 %v357
    %s362 = scalar_lea.vmem %s1, 96
    %v363 = vld [vmem:[%s362] sm:$0xff]
    %v364 = vld [vmem:[%s362 + $0x8] sm:$0xff]
    %v365 = vld [vmem:[%s362 + $0x10] sm:$0xf]
    %v367 = vsel %vm81, %v358, 0
    %v370 = vsel %vm81, %v359, 0
    %v373 = vsel %vm81, %v360, 0
    %v376 = vsel %vm81, %v361, 0
    %v379 = vsel %vm94, %v365, 0
    %381 = vmatpush.msra.mxu0 0.0
    %382 = vmatpush.msra.mxu0 0.0
    %383 = vmatpush.msra.mxu0 0.0
    %384 = vmatpush.msra.mxu0 0.0
    %385 = vmatpush.msra.mxu0 0.0
    %386 = vmatpush.msra.mxu0 0.0
    %387 = vmatpush.msra.mxu0 0.0
    %388 = vmatpush.msra.mxu0 0.0
    %389 = vmatpush.msra.mxu0 0.0
    %390 = vmatpush.msra.mxu0 0.0
    %391 = vmatpush.msra.mxu0 0.0
    %392 = vmatpush.msra.mxu0 0.0
    %393 = vmatpush.msra.mxu0 0.0
    %394 = vmatpush.msra.mxu0 %v379
    %395 = vmatpush.msra.mxu0 %v364
    %396 = vmatpush.msra.mxu0 %v363
    %397 = vmatmul.f32.gmra.mxu0 %v367
    %v398 = vpop.f32.mrf.mxu0
    %v399 = vadd.f32 0.0, %v398
    %400 = vmatmul.f32.gmra.mxu0 %v370
    %v401 = vpop.f32.mrf.mxu0
    %v402 = vadd.f32 0.0, %v401
    %403 = vmatmul.f32.gmra.mxu0 %v373
    %v404 = vpop.f32.mrf.mxu0
    %v405 = vadd.f32 0.0, %v404
    %406 = vmatmul.f32.gmra.mxu0 %v376
    %v407 = vpop.f32.mrf.mxu0
    %v408 = vadd.f32 0.0, %v407
    %409 = vdwg.mxu0
    %v410 = vadd.f32 %v329, %v399
    %v411 = vadd.f32 %v330, %v402
    %v412 = vadd.f32 %v331, %v405
    %v413 = vadd.f32 %v332, %v408
    %s414 = scalar_lea.vmem %s0, 160
    %v415 = vld [vmem:[%s414] sm:$0xff]
    %v416 = vld [vmem:[%s414 + $0x8] sm:$0xff]
    %v417 = vld [vmem:[%s414 + $0x10] sm:$0xff]
    %v418 = vld [vmem:[%s414 + $0x18] sm:$0xff]
    %419 = vset.pattern.permute.xlu0 0
    %420 = vperm.xlu0 %419, %v415
    %v421 = vpop.permute.xlu0 %420
    %422 = vset.pattern.permute.xlu0 0
    %423 = vperm.xlu0 %422, %v416
    %v424 = vpop.permute.xlu0 %423
    %425 = vset.pattern.permute.xlu0 0
    %426 = vperm.xlu0 %425, %v417
    %v427 = vpop.permute.xlu0 %426
    %428 = vset.pattern.permute.xlu0 0
    %429 = vperm.xlu0 %428, %v418
    %v430 = vpop.permute.xlu0 %429
    %vm431 = vcmp.eq.s32.totalorder %v421, %v16
    %vm432 = vcmp.eq.s32.totalorder %v424, %v16
    %vm433 = vcmp.eq.s32.totalorder %v427, %v16
    %vm434 = vcmp.eq.s32.totalorder %v430, %v16
    %v435 = vsel %vm431, 1, 0
    %v436 = vsel %vm432, 1, 0
    %v437 = vsel %vm433, 1, 0
    %v438 = vsel %vm434, 1, 0
    %v439 = vcvt.s32.f32 %v435
    %v440 = vcvt.s32.f32 %v436
    %v441 = vcvt.s32.f32 %v437
    %v442 = vcvt.s32.f32 %v438
    %s443 = scalar_lea.vmem %s1, 120
    %v444 = vld [vmem:[%s443] sm:$0xff]
    %v445 = vld [vmem:[%s443 + $0x8] sm:$0xff]
    %v446 = vld [vmem:[%s443 + $0x10] sm:$0xf]
    %v448 = vsel %vm81, %v439, 0
    %v451 = vsel %vm81, %v440, 0
    %v454 = vsel %vm81, %v441, 0
    %v457 = vsel %vm81, %v442, 0
    %v460 = vsel %vm94, %v446, 0
    %462 = vmatpush.msra.mxu0 0.0
    %463 = vmatpush.msra.mxu0 0.0
    %464 = vmatpush.msra.mxu0 0.0
    %465 = vmatpush.msra.mxu0 0.0
    %466 = vmatpush.msra.mxu0 0.0
    %467 = vmatpush.msra.mxu0 0.0
    %468 = vmatpush.msra.mxu0 0.0
    %469 = vmatpush.msra.mxu0 0.0
    %470 = vmatpush.msra.mxu0 0.0
    %471 = vmatpush.msra.mxu0 0.0
    %472 = vmatpush.msra.mxu0 0.0
    %473 = vmatpush.msra.mxu0 0.0
    %474 = vmatpush.msra.mxu0 0.0
    %475 = vmatpush.msra.mxu0 %v460
    %476 = vmatpush.msra.mxu0 %v445
    %477 = vmatpush.msra.mxu0 %v444
    %478 = vmatmul.f32.gmra.mxu0 %v448
    %v479 = vpop.f32.mrf.mxu0
    %v480 = vadd.f32 0.0, %v479
    %481 = vmatmul.f32.gmra.mxu0 %v451
    %v482 = vpop.f32.mrf.mxu0
    %v483 = vadd.f32 0.0, %v482
    %484 = vmatmul.f32.gmra.mxu0 %v454
    %v485 = vpop.f32.mrf.mxu0
    %v486 = vadd.f32 0.0, %v485
    %487 = vmatmul.f32.gmra.mxu0 %v457
    %v488 = vpop.f32.mrf.mxu0
    %v489 = vadd.f32 0.0, %v488
    %490 = vdwg.mxu0
    %v491 = vadd.f32 %v410, %v480
    %v492 = vadd.f32 %v411, %v483
    %v493 = vadd.f32 %v412, %v486
    %v494 = vadd.f32 %v413, %v489
    %s495 = scalar_lea.vmem %s0, 192
    %v496 = vld [vmem:[%s495] sm:$0xff]
    %v497 = vld [vmem:[%s495 + $0x8] sm:$0xff]
    %v498 = vld [vmem:[%s495 + $0x10] sm:$0xff]
    %v499 = vld [vmem:[%s495 + $0x18] sm:$0xff]
    %500 = vset.pattern.permute.xlu0 0
    %501 = vperm.xlu0 %500, %v496
    %v502 = vpop.permute.xlu0 %501
    %503 = vset.pattern.permute.xlu0 0
    %504 = vperm.xlu0 %503, %v497
    %v505 = vpop.permute.xlu0 %504
    %506 = vset.pattern.permute.xlu0 0
    %507 = vperm.xlu0 %506, %v498
    %v508 = vpop.permute.xlu0 %507
    %509 = vset.pattern.permute.xlu0 0
    %510 = vperm.xlu0 %509, %v499
    %v511 = vpop.permute.xlu0 %510
    %vm512 = vcmp.eq.s32.totalorder %v502, %v16
    %vm513 = vcmp.eq.s32.totalorder %v505, %v16
    %vm514 = vcmp.eq.s32.totalorder %v508, %v16
    %vm515 = vcmp.eq.s32.totalorder %v511, %v16
    %v516 = vsel %vm512, 1, 0
    %v517 = vsel %vm513, 1, 0
    %v518 = vsel %vm514, 1, 0
    %v519 = vsel %vm515, 1, 0
    %v520 = vcvt.s32.f32 %v516
    %v521 = vcvt.s32.f32 %v517
    %v522 = vcvt.s32.f32 %v518
    %v523 = vcvt.s32.f32 %v519
    %s524 = scalar_lea.vmem %s1, 144
    %v525 = vld [vmem:[%s524] sm:$0xff]
    %v526 = vld [vmem:[%s524 + $0x8] sm:$0xff]
    %v527 = vld [vmem:[%s524 + $0x10] sm:$0xf]
    %v529 = vsel %vm81, %v520, 0
    %v532 = vsel %vm81, %v521, 0
    %v535 = vsel %vm81, %v522, 0
    %v538 = vsel %vm81, %v523, 0
    %v541 = vsel %vm94, %v527, 0
    %543 = vmatpush.msra.mxu0 0.0
    %544 = vmatpush.msra.mxu0 0.0
    %545 = vmatpush.msra.mxu0 0.0
    %546 = vmatpush.msra.mxu0 0.0
    %547 = vmatpush.msra.mxu0 0.0
    %548 = vmatpush.msra.mxu0 0.0
    %549 = vmatpush.msra.mxu0 0.0
    %550 = vmatpush.msra.mxu0 0.0
    %551 = vmatpush.msra.mxu0 0.0
    %552 = vmatpush.msra.mxu0 0.0
    %553 = vmatpush.msra.mxu0 0.0
    %554 = vmatpush.msra.mxu0 0.0
    %555 = vmatpush.msra.mxu0 0.0
    %556 = vmatpush.msra.mxu0 %v541
    %557 = vmatpush.msra.mxu0 %v526
    %558 = vmatpush.msra.mxu0 %v525
    %559 = vmatmul.f32.gmra.mxu0 %v529
    %v560 = vpop.f32.mrf.mxu0
    %v561 = vadd.f32 0.0, %v560
    %562 = vmatmul.f32.gmra.mxu0 %v532
    %v563 = vpop.f32.mrf.mxu0
    %v564 = vadd.f32 0.0, %v563
    %565 = vmatmul.f32.gmra.mxu0 %v535
    %v566 = vpop.f32.mrf.mxu0
    %v567 = vadd.f32 0.0, %v566
    %568 = vmatmul.f32.gmra.mxu0 %v538
    %v569 = vpop.f32.mrf.mxu0
    %v570 = vadd.f32 0.0, %v569
    %571 = vdwg.mxu0
    %v572 = vadd.f32 %v491, %v561
    %v573 = vadd.f32 %v492, %v564
    %v574 = vadd.f32 %v493, %v567
    %v575 = vadd.f32 %v494, %v570
    %s576 = scalar_lea.vmem %s0, 224
    %v577 = vld [vmem:[%s576] sm:$0xff]
    %v578 = vld [vmem:[%s576 + $0x8] sm:$0xff]
    %v579 = vld [vmem:[%s576 + $0x10] sm:$0xff]
    %v580 = vld [vmem:[%s576 + $0x18] sm:$0xff]
    %581 = vset.pattern.permute.xlu0 0
    %582 = vperm.xlu0 %581, %v577
    %v583 = vpop.permute.xlu0 %582
    %584 = vset.pattern.permute.xlu0 0
    %585 = vperm.xlu0 %584, %v578
    %v586 = vpop.permute.xlu0 %585
    %587 = vset.pattern.permute.xlu0 0
    %588 = vperm.xlu0 %587, %v579
    %v589 = vpop.permute.xlu0 %588
    %590 = vset.pattern.permute.xlu0 0
    %591 = vperm.xlu0 %590, %v580
    %v592 = vpop.permute.xlu0 %591
    %vm593 = vcmp.eq.s32.totalorder %v583, %v16
    %vm594 = vcmp.eq.s32.totalorder %v586, %v16
    %vm595 = vcmp.eq.s32.totalorder %v589, %v16
    %vm596 = vcmp.eq.s32.totalorder %v592, %v16
    %v597 = vsel %vm593, 1, 0
    %v598 = vsel %vm594, 1, 0
    %v599 = vsel %vm595, 1, 0
    %v600 = vsel %vm596, 1, 0
    %v601 = vcvt.s32.f32 %v597
    %v602 = vcvt.s32.f32 %v598
    %v603 = vcvt.s32.f32 %v599
    %v604 = vcvt.s32.f32 %v600
    %s605 = scalar_lea.vmem %s1, 168
    %v606 = vld [vmem:[%s605] sm:$0xff]
    %v607 = vld [vmem:[%s605 + $0x8] sm:$0xff]
    %v608 = vld [vmem:[%s605 + $0x10] sm:$0xf]
    %v610 = vsel %vm81, %v601, 0
    %v613 = vsel %vm81, %v602, 0
    %v616 = vsel %vm81, %v603, 0
    %v619 = vsel %vm81, %v604, 0
    %v622 = vsel %vm94, %v608, 0
    %624 = vmatpush.msra.mxu0 0.0
    %625 = vmatpush.msra.mxu0 0.0
    %626 = vmatpush.msra.mxu0 0.0
    %627 = vmatpush.msra.mxu0 0.0
    %628 = vmatpush.msra.mxu0 0.0
    %629 = vmatpush.msra.mxu0 0.0
    %630 = vmatpush.msra.mxu0 0.0
    %631 = vmatpush.msra.mxu0 0.0
    %632 = vmatpush.msra.mxu0 0.0
    %633 = vmatpush.msra.mxu0 0.0
    %634 = vmatpush.msra.mxu0 0.0
    %635 = vmatpush.msra.mxu0 0.0
    %636 = vmatpush.msra.mxu0 0.0
    %637 = vmatpush.msra.mxu0 %v622
    %638 = vmatpush.msra.mxu0 %v607
    %639 = vmatpush.msra.mxu0 %v606
    %640 = vmatmul.f32.gmra.mxu0 %v610
    %v641 = vpop.f32.mrf.mxu0
    %v642 = vadd.f32 0.0, %v641
    %643 = vmatmul.f32.gmra.mxu0 %v613
    %v644 = vpop.f32.mrf.mxu0
    %v645 = vadd.f32 0.0, %v644
    %646 = vmatmul.f32.gmra.mxu0 %v616
    %v647 = vpop.f32.mrf.mxu0
    %v648 = vadd.f32 0.0, %v647
    %649 = vmatmul.f32.gmra.mxu0 %v619
    %v650 = vpop.f32.mrf.mxu0
    %v651 = vadd.f32 0.0, %v650
    %652 = vdwg.mxu0
    %v653 = vadd.f32 %v572, %v642
    %v654 = vadd.f32 %v573, %v645
    %v655 = vadd.f32 %v574, %v648
    %v656 = vadd.f32 %v575, %v651
    %v657 = vmax.f32 %v653, 0.0
    %v658 = vmax.f32 %v654, 0.0
    %v659 = vmax.f32 %v655, 0.0
    %v660 = vmax.f32 %v656, 0.0
    %vm661 = vcmask 261120
    %v662 = vsel %vm661, %v657, -inf
    %v663 = vsel %vm661, %v658, -inf
    %v664 = vmax.f32 %v662, %v663
    %v665 = vrot.slane %v664, 4
    %v666 = vmax.f32 %v664, %v665
    %v667 = vrot.slane %v666, 2
    %v668 = vmax.f32 %v666, %v667
    %v669 = vrot.slane %v668, 1
    %v670 = vmax.f32 %v668, %v669
    %v671 = vsel %vm661, %v659, -inf
    %v672 = vsel %vm661, %v660, -inf
    %v673 = vmax.f32 %v671, %v672
    %v674 = vrot.slane %v673, 4
    %v675 = vmax.f32 %v673, %v674
    %v676 = vrot.slane %v675, 2
    %v677 = vmax.f32 %v675, %v676
    %v678 = vrot.slane %v677, 1
    %v679 = vmax.f32 %v677, %v678
    %v680 = vld [vmem:[%s2] sm:$0xff]
    %v681 = vld [vmem:[%s2 + $0x8] sm:$0xff]
    %v682 = vld [vmem:[%s2 + $0x10] sm:$0xff]
    %v683 = vld [vmem:[%s2 + $0x18] sm:$0xff]
    %v684 = vld [vmem:[%s2 + $0x20] sm:$0x1]
    %v685 = vperm.slane %v684, 0
    %vm688 = vcmask 1041409
    %v689 = vsel %vm688, %v679, %v670
    %v690 = vsel %vm661, %v689, 0
    %692 = vmatpush.msra.mxu0 0.0
    %693 = vmatpush.msra.mxu0 0.0
    %694 = vmatpush.msra.mxu0 0.0
    %695 = vmatpush.msra.mxu0 0.0
    %696 = vmatpush.msra.mxu0 0.0
    %697 = vmatpush.msra.mxu0 0.0
    %698 = vmatpush.msra.mxu0 0.0
    %699 = vmatpush.msra.mxu0 0.0
    %700 = vmatpush.msra.mxu0 0.0
    %701 = vmatpush.msra.mxu0 0.0
    %702 = vmatpush.msra.mxu0 0.0
    %703 = vmatpush.msra.mxu0 0.0
    %704 = vmatpush.msra.mxu0 %v683
    %705 = vmatpush.msra.mxu0 %v682
    %706 = vmatpush.msra.mxu0 %v681
    %707 = vmatpush.msra.mxu0 %v680
    %708 = vmatmul.f32.gmra.mxu0 %v690
    %v709 = vpop.f32.mrf.mxu0
    %v710 = vadd.f32 %v685, %v709
    %711 = vdwg.mxu0
    %712 = vst [vmem:[#allocation2] sm:$0x3] %v710
    // Predicated region
    $region14: #{cnn2l_forward.1} parent=1 // pred_check
      _
    $region15: #{cnn2l_forward.1} parent=1 // pred_check_branch
      %714 = sbr.rel (0) target = $region17
    $region16: #{cnn2l_forward.1} parent=1 // pred_region
      %716 = vsyncadd [#allocation3], 0
      %s718 = sshll.u32 [#allocation2], 4
      %s719 = int_to_ptr.vmem [resolvable:$true] %s718
      %s720 = sshll.u32 %s3, 4
      %s721 = int_to_ptr.hbm [resolvable:$true] %s720
      %723 = dma.vmem_to_hbm [thread:$0]  %s719, 32, %s721, [#allocation3]
    $region17: #{cnn2l_forward.1} parent=1 // pred_fallthru
      _
    // Predicated region
    $region18: #{cnn2l_forward.1} parent=1 // pred_check
      _
    $region19: #{cnn2l_forward.1} parent=1 // pred_check_branch
      %725 = sbr.rel (0) target = $region21
    $region20: #{cnn2l_forward.1} parent=1 // pred_region
      %727 = dma.done [#allocation3], 32
    $region21: #{cnn2l_forward.1} parent=1 // pred_fallthru
      _
    %728 = vsyncpa [#allocation3], 1

</llo_original>
